<compile_context>
chip_gen: v7x
topology: tpu7x:2x2x1
jax: 0.10.0
libtpu: 0.0.40
codegen_flags: <defaults>
</compile_context>

<pallas_src>
import math

import jax
import jax.numpy as jnp
from jax.experimental import pallas as pl
from jax.experimental.pallas import tpu as pltpu


# ---------------------------------------------------------------------------
# Pallas kernels
# ---------------------------------------------------------------------------
def xgates1_kernel(x_ref, w_ref, b_ref, o_ref):
    """Input-gate GEMM for layer 0: o = x @ W_ihT[d] + b[d].  Grid = (direction, M-tile)."""
    acc = jnp.dot(x_ref[...], w_ref[0], preferred_element_type=jnp.float32)
    o_ref[0] = (acc + b_ref[0]).astype(o_ref.dtype)


def xgates2_kernel(x2_ref, wa_ref, wb_ref, b_ref, o_ref):
    """Input-gate GEMM for layers > 0 consuming [fwd|bwd] WITHOUT a materialized concat:
       o = out_f @ W_top[d] + out_b @ W_bot[d] + b[d]."""
    acc = jnp.dot(x2_ref[0], wa_ref[0], preferred_element_type=jnp.float32)
    acc = acc + jnp.dot(x2_ref[1], wb_ref[0], preferred_element_type=jnp.float32)
    o_ref[0] = (acc + b_ref[0]).astype(o_ref.dtype)


def gru_seq_kernel(xg_ref, whhT_ref, bhn_ref, h0_ref, out_ref, hlast_ref, h_scr):
    """One GRU step.  Grid = (direction 'parallel', time 'arbitrary').

    xg_ref   : (1, B, 3H)  precomputed input gates (b_ih + b_hh[r,z] folded in), time-reversed
                           for the backward direction via the index_map.
    whhT_ref : (1, H, 3H)  hidden-to-hidden weights for this direction (resident).
    bhn_ref  : (1, 1, H)   hidden bias of the n gate (the only bias that can't be folded).
    h0_ref   : (1, B, H)   initial hidden state for this direction.
    out_ref  : (1, B, H)   output slab (written in natural time order for both directions).
    hlast_ref: (1, B, H)   final hidden state (resident; written on the last step only).
    h_scr    : (B, H)      VMEM scratch carrying h across grid steps.
    """
    t = pl.program_id(1)

    @pl.when(t == 0)
    def _():
        h_scr[...] = h0_ref[0].astype(jnp.float32)

    h = h_scr[...]                                    # (B, H)
    H = h.shape[-1]
    xg = xg_ref[0]                                    # (B, 3H)
    hg = jnp.dot(h, whhT_ref[0], preferred_element_type=jnp.float32)   # (B, 3H)

    r = jax.nn.sigmoid(xg[:, :H] + hg[:, :H])
    z = jax.nn.sigmoid(xg[:, H:2 * H] + hg[:, H:2 * H])
    n = jnp.tanh(xg[:, 2 * H:] + r * (hg[:, 2 * H:] + bhn_ref[0]))
    h_new = (1.0 - z) * n + z * h

    h_scr[...] = h_new
    out_ref[0] = h_new.astype(out_ref.dtype)

    @pl.when(t == pl.num_programs(1) - 1)
    def _():
        hlast_ref[0] = h_new.astype(hlast_ref.dtype)


def sum_dirs_kernel(a_ref, b_ref, o_ref):
    o_ref[...] = a_ref[...] + b_ref[...]


# ---------------------------------------------------------------------------
# pallas_call wrappers
# ---------------------------------------------------------------------------
def _pick_tile(n, cap=512):
    """Largest tile <= cap that divides n and keeps the sublane dim aligned (mult of 8),
    falling back to the full extent."""
    if n <= cap:
        return n
    best = None
    for t in range(8, cap + 1, 8):
        if n % t == 0:
            best = t
    return best if best is not None else n


def make_xgates_l0(M, D, G, tm, dtype=jnp.float32):
    grid_spec = pltpu.PrefetchScalarGridSpec(
        num_scalar_prefetch=0,
        grid=(2, M // tm),
        in_specs=[
            pl.BlockSpec((tm, D), lambda d, m: (m, 0)),         # x rows (shared by both dirs)
            pl.BlockSpec((1, D, G), lambda d, m: (d, 0, 0)),    # W_ihT per direction (resident)
            pl.BlockSpec((1, 1, G), lambda d, m: (d, 0, 0)),    # folded bias per direction
        ],
        out_specs=pl.BlockSpec((1, tm, G), lambda d, m: (d, m, 0)),
    )
    return pl.pallas_call(
        xgates1_kernel,
        out_shape=jax.ShapeDtypeStruct((2, M, G), dtype),
        grid_spec=grid_spec,
        compiler_params=pltpu.CompilerParams(
            dimension_semantics=("parallel", "parallel")),
    )


def make_xgates_l(M, H, G, tm, dtype=jnp.float32):
    grid_spec = pltpu.PrefetchScalarGridSpec(
        num_scalar_prefetch=0,
        grid=(2, M // tm),
        in_specs=[
            pl.BlockSpec((2, tm, H), lambda d, m: (0, m, 0)),   # prev-layer [fwd; bwd] rows
            pl.BlockSpec((1, H, G), lambda d, m: (d, 0, 0)),    # W_ihT top half (fwd input part)
            pl.BlockSpec((1, H, G), lambda d, m: (d, 0, 0)),    # W_ihT bottom half (bwd input part)
            pl.BlockSpec((1, 1, G), lambda d, m: (d, 0, 0)),    # folded bias
        ],
        out_specs=pl.BlockSpec((1, tm, G), lambda d, m: (d, m, 0)),
    )
    return pl.pallas_call(
        xgates2_kernel,
        out_shape=jax.ShapeDtypeStruct((2, M, G), dtype),
        grid_spec=grid_spec,
        compiler_params=pltpu.CompilerParams(
            dimension_semantics=("parallel", "parallel")),
    )


def make_gru_scan(T, B, H, dtype=jnp.float32):
    """Fused bidirectional GRU recurrence over a time-major sequence.

    Inputs:  xg (2T, B, 3H) [fwd rows 0..T-1, bwd rows T..2T-1, natural time order],
             whhT (2, H, 3H), bhn (2, 1, H), h0 (2, B, H).
    Outputs: out (2T, B, H) in natural time order for both halves, hlast (2, B, H).
    """
    G = 3 * H
    # combined row index: d=0 -> t, d=1 -> 2T-1-t (time reversal done here, not with jnp.flip)
    def tmap(d, t):
        return (d * (2 * T - 1) + (1 - 2 * d) * t, 0, 0)

    grid_spec = pltpu.PrefetchScalarGridSpec(
        num_scalar_prefetch=0,
        grid=(2, T),
        in_specs=[
            pl.BlockSpec((1, B, G), tmap),                      # precomputed input gates
            pl.BlockSpec((1, H, G), lambda d, t: (d, 0, 0)),    # W_hhT (resident per direction)
            pl.BlockSpec((1, 1, H), lambda d, t: (d, 0, 0)),    # b_hh_n
            pl.BlockSpec((1, B, H), lambda d, t: (d, 0, 0)),    # h0
        ],
        out_specs=[
            pl.BlockSpec((1, B, H), tmap),                      # outputs (natural time order)
            pl.BlockSpec((1, B, H), lambda d, t: (d, 0, 0)),    # final hidden (resident)
        ],
        scratch_shapes=[pltpu.VMEM((B, H), jnp.float32)],
    )
    return pl.pallas_call(
        gru_seq_kernel,
        out_shape=(jax.ShapeDtypeStruct((2 * T, B, H), dtype),
                   jax.ShapeDtypeStruct((2, B, H), dtype)),
        grid_spec=grid_spec,
        compiler_params=pltpu.CompilerParams(
            dimension_semantics=("parallel", "arbitrary")),
    )


def make_sum_dirs(T, B, H, tc, dtype=jnp.float32):
    """outputs[:, :H] + outputs[:, H:] of the last layer, blocked over time chunks."""
    grid_spec = pltpu.PrefetchScalarGridSpec(
        num_scalar_prefetch=0,
        grid=(T // tc,),
        in_specs=[
            pl.BlockSpec((tc, B, H), lambda c: (c, 0, 0)),            # forward half
            pl.BlockSpec((tc, B, H), lambda c: (T // tc + c, 0, 0)),  # backward half
        ],
        out_specs=pl.BlockSpec((tc, B, H), lambda c: (c, 0, 0)),
    )
    return pl.pallas_call(
        sum_dirs_kernel,
        out_shape=jax.ShapeDtypeStruct((T, B, H), dtype),
        grid_spec=grid_spec,
        compiler_params=pltpu.CompilerParams(dimension_semantics=("parallel",)),
    )


# ---------------------------------------------------------------------------
# Parameter init / packing
# ---------------------------------------------------------------------------
def init_encoder_params(key, vocab_size, embed_size, hidden_size, n_layers):
    """Raw torch-layout parameters: list indexed by layer*2 + direction."""
    k_emb, key = jax.random.split(key)
    embedding = jax.random.normal(k_emb, (vocab_size, embed_size), jnp.float32) * 0.1

    bound = 1.0 / math.sqrt(hidden_size)
    raw = []
    for layer in range(n_layers):
        d_in = embed_size if layer == 0 else 2 * hidden_size
        for _direction in range(2):
            key, k0, k1, k2, k3 = jax.random.split(key, 5)
            raw.append(dict(
                w_ih=jax.random.uniform(k0, (3 * hidden_size, d_in), jnp.float32, -bound, bound),
                w_hh=jax.random.uniform(k1, (3 * hidden_size, hidden_size), jnp.float32, -bound, bound),
                b_ih=jax.random.uniform(k2, (3 * hidden_size,), jnp.float32, -bound, bound),
                b_hh=jax.random.uniform(k3, (3 * hidden_size,), jnp.float32, -bound, bound),
            ))
    return embedding, raw


def pack_encoder_params(raw, embed_size, hidden_size, n_layers):
    """Pre-transpose weights, stack both directions, fold r/z biases into the input-gate bias."""
    H = hidden_size
    packed = []
    for layer in range(n_layers):
        w_in0, w_in_a, w_in_b, b_in, whhT, bhn = [], [], [], [], [], []
        for direction in range(2):
            p = raw[layer * 2 + direction]
            wihT = p['w_ih'].T                                   # (d_in, 3H)
            b_fold = p['b_ih'] + jnp.concatenate(
                [p['b_hh'][:2 * H], jnp.zeros((H,), jnp.float32)])
            if layer == 0:
                w_in0.append(wihT)
            else:
                w_in_a.append(wihT[:H])                          # multiplies fwd half of input
                w_in_b.append(wihT[H:])                          # multiplies bwd half of input
            b_in.append(b_fold[None, :])                         # (1, 3H)
            whhT.append(p['w_hh'].T)                             # (H, 3H)
            bhn.append(p['b_hh'][None, 2 * H:])                  # (1, H)
        entry = dict(b_in=jnp.stack(b_in, 0), whhT=jnp.stack(whhT, 0), bhn=jnp.stack(bhn, 0))
        if layer == 0:
            entry['w_in'] = jnp.stack(w_in0, 0)                  # (2, E, 3H)
        else:
            entry['w_in_a'] = jnp.stack(w_in_a, 0)               # (2, H, 3H)
            entry['w_in_b'] = jnp.stack(w_in_b, 0)               # (2, H, 3H)
        packed.append(entry)
    return packed


# ---------------------------------------------------------------------------
# Forward pass (mirrors Encoder.forward)
# ---------------------------------------------------------------------------
def encoder_forward(embedding, packed_params, input_seqs, hidden=None, *,
                    hidden_size, n_layers, input_type='index'):
    """Returns (outputs [B,T,H], hidden [2*n_layers, B, H]) — same semantics as the nn.Module."""
    H = hidden_size
    G = 3 * H
    if input_type == 'index':
        x_tm = embedding[input_seqs.T]                 # gather directly in time-major (T, B, E)
    else:
        x_tm = jnp.transpose(input_seqs, (1, 0, 2))    # (T, B, E)
    # nn.Dropout is identity in eval mode (and unused in the reference forward anyway).

    T, B, E = x_tm.shape
    M = T * B
    tm = _pick_tile(M)
    tc = _pick_tile(T)

    if hidden is None:
        hidden = jnp.zeros((n_layers * 2, B, H), jnp.float32)

    h_finals = []
    prev = None                                        # (2, M, H) previous layer outputs
    out2 = None                                        # (2T, B, H) last layer outputs
    for layer in range(n_layers):
        p = packed_params[layer]
        if layer == 0:
            xg = make_xgates_l0(M, E, G, tm)(x_tm.reshape(M, E), p['w_in'], p['b_in'])
        else:
            xg = make_xgates_l(M, H, G, tm)(prev, p['w_in_a'], p['w_in_b'], p['b_in'])
        xg = xg.reshape(2 * T, B, G)                   # contiguous reshape (free)

        out2, hlast = make_gru_scan(T, B, H)(
            xg, p['whhT'], p['bhn'], hidden[2 * layer:2 * layer + 2])
        h_finals.append(hlast)                         # (2, B, H) = [fwd, bwd]
        prev = out2.reshape(2, M, H)                   # contiguous reshape (free)
        # (inter-layer GRU dropout: identity in eval mode)

    outputs_tm = make_sum_dirs(T, B, H, tc)(out2, out2)   # (T, B, H) = fwd + bwd
    outputs = jnp.transpose(outputs_tm, (1, 0, 2))         # back to batch-first (B, T, H)
    hidden_out = jnp.concatenate(h_finals, axis=0)         # (2*n_layers, B, H), torch ordering
    return outputs, hidden_out


# ---------------------------------------------------------------------------
# Pure-JAX reference (for correctness check)
# ---------------------------------------------------------------------------
def _ref_gru_dir(x_tm, p, h0):
    T = x_tm.shape[0]
    H = h0.shape[-1]
    outs = []
    h = h0
    for t in range(T):
        xg = x_tm[t] @ p['w_ih'].T + p['b_ih']
        hg = h @ p['w_hh'].T + p['b_hh']
        r = jax.nn.sigmoid(xg[:, :H] + hg[:, :H])
        z = jax.nn.sigmoid(xg[:, H:2 * H] + hg[:, H:2 * H])
        n = jnp.tanh(xg[:, 2 * H:] + r * hg[:, 2 * H:])
        h = (1.0 - z) * n + z * h
        outs.append(h)
    return jnp.stack(outs, axis=0), h


def encoder_forward_ref(embedding, raw_params, input_seqs, *, hidden_size, n_layers):
    embedded = embedding[input_seqs]
    B, T, _ = embedded.shape
    H = hidden_size
    x = jnp.transpose(embedded, (1, 0, 2))
    hidden = jnp.zeros((n_layers * 2, B, H), jnp.float32)
    h_finals = []
    out_f = out_b = None
    for layer in range(n_layers):
        out_f, h_f = _ref_gru_dir(x, raw_params[layer * 2], hidden[layer * 2])
        out_b_rev, h_b = _ref_gru_dir(jnp.flip(x, 0), raw_params[layer * 2 + 1],
                                      hidden[layer * 2 + 1])
        out_b = jnp.flip(out_b_rev, 0)
        h_finals += [h_f, h_b]
        x = jnp.concatenate([out_f, out_b], axis=-1)
    outputs = jnp.transpose(out_f + out_b, (1, 0, 2))
    return outputs, jnp.stack(h_finals, axis=0)


# ---------------------------------------------------------------------------
if __name__ == "__main__":
    VOCAB, EMBED, HIDDEN, N_LAYERS = 32, 64, 128, 2   # H=128 keeps gate slices lane-aligned
    B, T = 2, 8
    DROPOUT = 0.1  # identity in eval-mode forward

    key = jax.random.PRNGKey(0)
    k_params, k_ids = jax.random.split(key)
    embedding, raw_params = init_encoder_params(k_params, VOCAB, EMBED, HIDDEN, N_LAYERS)
    packed_params = pack_encoder_params(raw_params, EMBED, HIDDEN, N_LAYERS)
    input_ids = jax.random.randint(k_ids, (B, T), 0, VOCAB, dtype=jnp.int32)

    outputs, hidden = encoder_forward(embedding, packed_params, input_ids,
                                      hidden_size=HIDDEN, n_layers=N_LAYERS)
    outputs = jax.block_until_ready(outputs)
    hidden = jax.block_until_ready(hidden)

    assert outputs.shape == (B, T, HIDDEN)
    assert hidden.shape == (N_LAYERS * 2, B, HIDDEN)

    ref_out, ref_hid = encoder_forward_ref(embedding, raw_params, input_ids,
                                           hidden_size=HIDDEN, n_layers=N_LAYERS)
    assert jnp.allclose(outputs, ref_out, atol=1e-4, rtol=1e-4)
    assert jnp.allclose(hidden, ref_hid, atol=1e-4, rtol=1e-4)

    print("KERNEL_OK")
</pallas_src>

<mosaic_0001>
module attributes {stable_mosaic.version = 11 : i64} {
  func.func @xgates1_kernel(%arg0: i32, %arg1: i32, %arg2: memref<16x64xf32, #tpu.memory_space<vmem>>, %arg3: memref<1x64x384xf32, #tpu.memory_space<vmem>>, %arg4: memref<1x1x384xf32, #tpu.memory_space<vmem>>, %arg5: memref<1x16x384xf32, #tpu.memory_space<vmem>>) attributes {dimension_semantics = [#tpu.dimension_semantics<parallel>, #tpu.dimension_semantics<parallel>], iteration_bounds = array<i64: 2, 1>, scalar_prefetch = 0 : i64, scratch_operands = 0 : i64, tpu.core_type = #tpu.core_type<tc>, window_params = [{transform_indices = @transform_0, window_bounds = array<i64: 16, 64>}, {transform_indices = @transform_1, window_bounds = array<i64: 1, 64, 384>}, {transform_indices = @transform_2, window_bounds = array<i64: 1, 1, 384>}, {transform_indices = @transform_3, window_bounds = array<i64: 1, 16, 384>}]} {
    %c0 = arith.constant 0 : index
    %c0_0 = arith.constant 0 : index
    %0 = vector.load %arg2[%c0, %c0_0] : memref<16x64xf32, #tpu.memory_space<vmem>>, vector<16x64xf32>
    %c0_1 = arith.constant 0 : index
    %c0_2 = arith.constant 0 : index
    %c0_3 = arith.constant 0 : index
    %1 = vector.load %arg3[%c0_1, %c0_2, %c0_3] : memref<1x64x384xf32, #tpu.memory_space<vmem>>, vector<1x64x384xf32>
    %2 = vector.shape_cast %1 : vector<1x64x384xf32> to vector<64x384xf32>
    %cst = arith.constant dense<0.000000e+00> : vector<16x384xf32>
    %3 = tpu.matmul %0, %2, %cst {dimension_numbers = #tpu.dot_dimension_numbers<[1], [0], [0], [1], [0, 0, 1, 1], [], []>} : vector<16x64xf32>, vector<64x384xf32>, vector<16x384xf32> -> vector<16x384xf32>
    %c0_4 = arith.constant 0 : index
    %c0_5 = arith.constant 0 : index
    %c0_6 = arith.constant 0 : index
    %4 = vector.load %arg4[%c0_4, %c0_5, %c0_6] : memref<1x1x384xf32, #tpu.memory_space<vmem>>, vector<1x1x384xf32>
    %5 = vector.shape_cast %4 : vector<1x1x384xf32> to vector<1x384xf32>
    %6 = vector.broadcast %5 : vector<1x384xf32> to vector<16x384xf32>
    %7 = arith.addf %3, %6 : vector<16x384xf32>
    %c0_7 = arith.constant 0 : index
    %c0_8 = arith.constant 0 : index
    %c0_9 = arith.constant 0 : index
    %8 = vector.load %arg5[%c0_7, %c0_8, %c0_9] : memref<1x16x384xf32, #tpu.memory_space<vmem>>, vector<1x16x384xf32>
    %9 = vector.shape_cast %8 : vector<1x16x384xf32> to vector<16x384xf32>
    %10 = vector.shape_cast %7 : vector<16x384xf32> to vector<1x16x384xf32>
    tpu.vector_store %arg5[%c0_7, %c0_8, %c0_9], %10 {strides = array<i32>} : memref<1x16x384xf32, #tpu.memory_space<vmem>>, vector<1x16x384xf32>,
    return
  }
  func.func @transform_0(%arg0: i32, %arg1: i32) -> (i32, i32) {
    %c0_i32 = arith.constant 0 : i32
    %c0_i32_0 = arith.constant 0 : i32
    return %arg1, %c0_i32 : i32, i32
  }
  func.func @transform_1(%arg0: i32, %arg1: i32) -> (i32, i32, i32) {
    %c0_i32 = arith.constant 0 : i32
    %c0_i32_0 = arith.constant 0 : i32
    %c0_i32_1 = arith.constant 0 : i32
    return %arg0, %c0_i32, %c0_i32_0 : i32, i32, i32
  }
  func.func @transform_2(%arg0: i32, %arg1: i32) -> (i32, i32, i32) {
    %c0_i32 = arith.constant 0 : i32
    %c0_i32_0 = arith.constant 0 : i32
    %c0_i32_1 = arith.constant 0 : i32
    return %arg0, %c0_i32, %c0_i32_0 : i32, i32, i32
  }
  func.func @transform_3(%arg0: i32, %arg1: i32) -> (i32, i32, i32) {
    %c0_i32 = arith.constant 0 : i32
    %c0_i32_0 = arith.constant 0 : i32
    return %arg0, %arg1, %c0_i32 : i32, i32, i32
  }
}

</mosaic_0001>

<llo_original>
// kernel: tpu_custom_call.1
$region0: #{tpu_custom_call.1}
  #allocation0 [shape = 'u32[]', space=smem, size = 0x4, offset = 0x4, fixed_abs, tag = 'smem constant byte address 0x4 - core index']
  #allocation1 [shape = 'u32[144,128]{1,0:T(1,128)}', space=vmem, size = 0x12000, scoped, tag = 'internal scratch']
  %s0 = inlined_call_operand.hbm [shape: f32[16,64], index: 0, kind: input, shape index: {}]
  %s1 = inlined_call_operand.hbm [shape: f32[2,64,384], index: 1, kind: input, shape index: {}]
  %s2 = inlined_call_operand.vmem [shape: f32[2,1,384], index: 2, kind: input, shape index: {}]
  %s3 = inlined_call_operand.hbm [shape: f32[2,16,384], index: 3, kind: output, shape index: {}]
  %s4 = sld [smem:[#allocation0]]
  $region53: #{tpu_custom_call.1} parent=0
    _
  %s6 = ssub.s32 1, %s4
  %s7 = scalar_select 0, %s6, %s4
  $region1: #{tpu_custom_call.1} parent=0
    #allocation2 [shape = 'u8[8192]{0}', space=vmem, size = 0x2000, scoped, tag = 'input window, operand 0, single buffered']
    #allocation3 [shape = 's32[2]{0}', space=sflag, size = 0x8, scoped, tag = 'scoped memory for tpu_custom_call.1']
    #allocation4 [shape = 's32[2]{0}', space=sflag, size = 0x8, scoped, tag = 'scoped memory for tpu_custom_call.1']
    #allocation5 [shape = 'u8[196608]{0}', space=vmem, size = 0x30000, scoped, tag = 'input window, operand 1']
    #allocation6 [shape = 's32[2]{0}', space=sflag, size = 0x8, scoped, tag = 'scoped memory for tpu_custom_call.1']
    #allocation7 [shape = 'u8[49152]{0}', space=vmem, size = 0xc000, scoped, tag = 'output window, operand 0']
    %8 = vsyncpa [#allocation3], 0
    %9 = vsyncpa [#allocation6], 0
    %s10 = scalar_lea.sflag [#allocation6], 1
    %11 = vsyncpa %s10, 0
    %12 = vsyncpa [#allocation4], 0
    %s13 = scalar_lea.sflag [#allocation4], 1
    %14 = vsyncpa %s13, 0
    loop: start=0, step=1, limit=4
    $region2: #{tpu_custom_call.1} parent=1 // loop_pre_header
      _
    $region3: #{tpu_custom_call.1} parent=1 // loop_header
      %s16 = sphi 0, %s20
      %p17 = scmp.ge.s32.totalorder %s16, 4
      %s23 = sphi 0, %s35
      %s24 = sphi 0, %s31
      %s25 = sphi 0, %s23
      %s26 = sphi 0, %s24
      %s27 = sphi 0, %s25
      %s28 = sphi 0, %s26
      %s38 = sphi 0, %s40
      %s41 = sphi 0, %s38
      %s42 = sphi 0, %s41
      %s58 = sphi 0, %s42
      %s64 = sphi 0, %s66
      %s67 = sphi 0, %s64
      %s68 = sphi 0, %s67
      %s84 = sphi 0, %s68
      %s90 = sphi 0, %s92
      %s93 = sphi 0, %s90
      %s94 = sphi 0, %s93
      %s110 = sphi 0, %s94
      %s118 = sphi 0, %s120
      %s121 = sphi 0, %s118
      %s122 = sphi 0, %s121
      %s138 = sphi 0, %s122
    $region4: #{tpu_custom_call.1} parent=1 // loop_header_branch
      %19 = sbr.rel (%p17) target = $region8
    $region5: #{tpu_custom_call.1} parent=1 // loop_body
      %s21 = ssub.s32 %s16, 1
      %s22 = ssub.s32 %s16, 2
      %s29 = sadd.s32 1, %s24
      %p30 = scmp.ge.s32.totalorder %s29, 1
      %s31 = scalar_select %p30, 0, %s29
      %s32 = sadd.s32 1, %s23
      %s33 = scalar_select %p30, %s32, %s23
      %p34 = scmp.ge.s32.totalorder %s33, 2
      %s35 = scalar_select %p34, 0, %s33
      %s36 = ssub.s32 %s24, %s31
      %p37 = scmp.eq.s32.totalorder %s36, 0
      %s39 = sadd.s32 %s38, 1
      %s40 = scalar_select %p37, %s38, %s39
      %p43 = pneg %p37
      %p44 = scmp.eq.s32.totalorder %s16, 1
      %p45 = por %p43, %p44
      %p46 = scmp.ne.s32.totalorder %s38, %s41
      %p47 = scmp.eq.s32.totalorder %s16, 0
      %p48 = por %p46, %p47
      %p49 = scmp.ne.s32.totalorder %s38, %s41
      %p50 = scmp.eq.s32.totalorder %s21, 1
      %p51 = por %p49, %p50
      %p52 = scmp.ne.s32.totalorder %s41, %s42
      %p53 = scmp.eq.s32.totalorder %s21, 0
      %p54 = por %p52, %p53
      %p55 = scmp.ne.s32.totalorder %s41, %s42
      %p56 = scmp.eq.s32.totalorder %s22, 1
      %p57 = por %p55, %p56
      %p59 = scmp.ne.s32.totalorder %s42, %s58
      %p60 = scmp.eq.s32.totalorder %s22, 0
      %p61 = por %p59, %p60
      %s62 = ssub.s32 %s23, %s35
      %p63 = scmp.eq.s32.totalorder %s62, 0
      %s65 = sadd.s32 %s64, 1
      %s66 = scalar_select %p63, %s64, %s65
      %p69 = pneg %p63
      %p70 = scmp.eq.s32.totalorder %s16, 1
      %p71 = por %p69, %p70
      %p72 = scmp.ne.s32.totalorder %s64, %s67
      %p73 = scmp.eq.s32.totalorder %s16, 0
      %p74 = por %p72, %p73
      %p75 = scmp.ne.s32.totalorder %s64, %s67
      %p76 = scmp.eq.s32.totalorder %s21, 1
      %p77 = por %p75, %p76
      %p78 = scmp.ne.s32.totalorder %s67, %s68
      %p79 = scmp.eq.s32.totalorder %s21, 0
      %p80 = por %p78, %p79
      %p81 = scmp.ne.s32.totalorder %s67, %s68
      %p82 = scmp.eq.s32.totalorder %s22, 1
      %p83 = por %p81, %p82
      %p85 = scmp.ne.s32.totalorder %s68, %s84
      %p86 = scmp.eq.s32.totalorder %s22, 0
      %p87 = por %p85, %p86
      %s88 = ssub.s32 %s23, %s35
      %p89 = scmp.eq.s32.totalorder %s88, 0
      %s91 = sadd.s32 %s90, 1
      %s92 = scalar_select %p89, %s90, %s91
      %p95 = pneg %p89
      %p96 = scmp.eq.s32.totalorder %s16, 1
      %p97 = por %p95, %p96
      %p98 = scmp.ne.s32.totalorder %s90, %s93
      %p99 = scmp.eq.s32.totalorder %s16, 0
      %p100 = por %p98, %p99
      %p101 = scmp.ne.s32.totalorder %s90, %s93
      %p102 = scmp.eq.s32.totalorder %s21, 1
      %p103 = por %p101, %p102
      %p104 = scmp.ne.s32.totalorder %s93, %s94
      %p105 = scmp.eq.s32.totalorder %s21, 0
      %p106 = por %p104, %p105
      %p107 = scmp.ne.s32.totalorder %s93, %s94
      %p108 = scmp.eq.s32.totalorder %s22, 1
      %p109 = por %p107, %p108
      %p111 = scmp.ne.s32.totalorder %s94, %s110
      %p112 = scmp.eq.s32.totalorder %s22, 0
      %p113 = por %p111, %p112
      %s114 = ssub.s32 %s23, %s35
      %s115 = ssub.s32 %s24, %s31
      %s116 = sor.u32 %s114, %s115
      %p117 = scmp.eq.s32.totalorder %s116, 0
      %s119 = sadd.s32 %s118, 1
      %s120 = scalar_select %p117, %s118, %s119
      %p123 = pneg %p117
      %p124 = scmp.eq.s32.totalorder %s16, 1
      %p125 = por %p123, %p124
      %p126 = scmp.ne.s32.totalorder %s118, %s121
      %p127 = scmp.eq.s32.totalorder %s16, 0
      %p128 = por %p126, %p127
      %p129 = scmp.ne.s32.totalorder %s118, %s121
      %p130 = scmp.eq.s32.totalorder %s21, 1
      %p131 = por %p129, %p130
      %p132 = scmp.ne.s32.totalorder %s121, %s122
      %p133 = scmp.eq.s32.totalorder %s21, 0
      %p134 = por %p132, %p133
      %p135 = scmp.ne.s32.totalorder %s121, %s122
      %p136 = scmp.eq.s32.totalorder %s22, 1
      %p137 = por %p135, %p136
      %p139 = scmp.ne.s32.totalorder %s122, %s138
      %p140 = scmp.eq.s32.totalorder %s22, 0
      %p141 = por %p139, %p140
      %p142 = scmp.le.s32.totalorder 1, %s16
      %p143 = scmp.lt.s32.totalorder %s16, 3
      %p144 = pnand %p142, %p143
      %p145 = pneg %p144
      // Predicated region
      $region9: #{tpu_custom_call.1} parent=5 // pred_check
        _
      $region10: #{tpu_custom_call.1} parent=5 // pred_check_branch
        %147 = sbr.rel (%p144) target = $region12
      $region11: #{tpu_custom_call.1} parent=5 // pred_region
        %s148 = ssub.s32 %s16, 1
        // Predicated region
        $region13: #{tpu_custom_call.1} parent=11 // pred_check
          %p149 = pneg %p54
        $region14: #{tpu_custom_call.1} parent=11 // pred_check_branch
          %151 = sbr.rel (%p149) target = $region16
        $region15: #{tpu_custom_call.1} parent=11 // pred_region
          %s152 = smul.u32 2, %s26
          %s154 = ssub.s32 256, 256
          %155 = vsyncadd [#allocation3], %s154
          %s156 = smul.addr %s152, 128
          %s157 = scalar_lea.hbm %s0, %s156
          %s158 = sshll.u32 [#allocation2], 4
          %s159 = int_to_ptr.vmem [resolvable:$true] %s158
          %164 = dma.hbm_to_vmem [thread:$0]  %s157, 256, %s159, [#allocation3], 128, 128, 8
        $region16: #{tpu_custom_call.1} parent=11 // pred_fallthru
          _
      $region12: #{tpu_custom_call.1} parent=5 // pred_fallthru
        _
      %p165 = scmp.lt.s32.totalorder %s16, 2
      // Predicated region
      $region17: #{tpu_custom_call.1} parent=5 // pred_check
        %p166 = pneg %p165
      $region18: #{tpu_custom_call.1} parent=5 // pred_check_branch
        %168 = sbr.rel (%p166) target = $region20
      $region19: #{tpu_custom_call.1} parent=5 // pred_region
        // Predicated region
        $region21: #{tpu_custom_call.1} parent=19 // pred_check
          %p169 = pneg %p74
        $region22: #{tpu_custom_call.1} parent=19 // pred_check_branch
          %171 = sbr.rel (%p169) target = $region24
        $region23: #{tpu_custom_call.1} parent=19 // pred_region
          %s172 = sand.u32 %s64, 1
          %s173 = scalar_lea.sflag [#allocation6], %s172
          %s174 = sand.u32 %s64, 1
          %s175 = smul.addr %s174, 192
          %s176 = scalar_lea.vmem [#allocation5], %s175
          %s178 = ssub.s32 3072, 3072
          %179 = vsyncadd %s173, %s178
          %s180 = smul.addr %s23, 24
          %s181 = smul.addr %s180, 128
          %s182 = scalar_lea.hbm %s1, %s181
          %s183 = sshll.u32 %s176, 4
          %s184 = int_to_ptr.vmem [resolvable:$true] %s183
          %189 = dma.hbm_to_vmem [thread:$0]  %s182, 3072, %s184, %s173, 384, 384, 24
        $region24: #{tpu_custom_call.1} parent=19 // pred_fallthru
          _
        // Predicated region
        $region25: #{tpu_custom_call.1} parent=19 // pred_check
          %p190 = pneg %p100
        $region26: #{tpu_custom_call.1} parent=19 // pred_check_branch
          %192 = sbr.rel (%p190) target = $region28
        $region27: #{tpu_custom_call.1} parent=19 // pred_region
          %p193 = scmp.lt.s32.totalorder %s23, 1
          %s194 = scalar_select %p193, %s23, 1
          %s195 = smul.addr %s194, 3
          %s196 = scalar_lea.vmem %s2, %s195
        $region28: #{tpu_custom_call.1} parent=19 // pred_fallthru
          _
      $region20: #{tpu_custom_call.1} parent=5 // pred_fallthru
        _
      %p197 = scmp.le.s32.totalorder 1, %s16
      %p198 = scmp.lt.s32.totalorder %s16, 3
      %p199 = pnand %p197, %p198
      %p200 = pneg %p199
      // Predicated region
      $region29: #{tpu_custom_call.1} parent=5 // pred_check
        _
      $region30: #{tpu_custom_call.1} parent=5 // pred_check_branch
        %202 = sbr.rel (%p199) target = $region32
      $region31: #{tpu_custom_call.1} parent=5 // pred_region
        %s203 = ssub.s32 %s16, 1
        // Predicated region
        $region33: #{tpu_custom_call.1} parent=31 // pred_check
          %p204 = pneg %p54
        $region34: #{tpu_custom_call.1} parent=31 // pred_check_branch
          %206 = sbr.rel (%p204) target = $region36
        $region35: #{tpu_custom_call.1} parent=31 // pred_region
          %207 = dma.done [#allocation3], 256
        $region36: #{tpu_custom_call.1} parent=31 // pred_fallthru
          _
        %s208 = sand.u32 %s67, 1
        %s209 = scalar_lea.sflag [#allocation6], %s208
        %s210 = sand.u32 %s67, 1
        %s211 = smul.addr %s210, 192
        %s212 = scalar_lea.vmem [#allocation5], %s211
        // Predicated region
        $region37: #{tpu_custom_call.1} parent=31 // pred_check
          %p213 = pneg %p80
        $region38: #{tpu_custom_call.1} parent=31 // pred_check_branch
          %215 = sbr.rel (%p213) target = $region40
        $region39: #{tpu_custom_call.1} parent=31 // pred_region
          %216 = dma.done %s209, 3072
        $region40: #{tpu_custom_call.1} parent=31 // pred_fallthru
          _
        %p217 = pneg %p54
        %p218 = pneg %p51
        %s219 = sand.u32 %s67, 1
        %s220 = scalar_lea.sflag [#allocation6], %s219
        %s221 = sand.u32 %s67, 1
        %s222 = smul.addr %s221, 192
        %s223 = scalar_lea.vmem [#allocation5], %s222
        %p224 = pneg %p80
        %p225 = pneg %p77
        %p226 = scmp.lt.s32.totalorder %s25, 1
        %s227 = scalar_select %p226, %s25, 1
        %s228 = smul.addr %s227, 3
        %s229 = scalar_lea.vmem %s2, %s228
        %p230 = pneg %p106
        %p231 = pneg %p103
        %p232 = pneg %p134
        %p233 = pneg %p131
        %s234 = sand.u32 %s121, 1
        %s235 = scalar_lea.sflag [#allocation4], %s234
        %s236 = sand.u32 %s121, 1
        %s237 = smul.addr %s236, 48
        %s238 = scalar_lea.vmem [#allocation7], %s237
        %s239 = smul.u32 2, %s26
        %p240 = scmp.lt.s32.totalorder %s25, 1
        %s241 = scalar_select %p240, %s25, 1
        %s242 = smul.addr %s241, 3
        %s243 = scalar_lea.vmem %s2, %s242
        %s244 = smul.u32 2, %s26
        %v245 = vld [vmem:[#allocation2] sm:$0xff]
        %v246 = vld [vmem:[#allocation2 + $0x8] sm:$0xff]
        %v247 = vld [vmem:[%s212] sm:$0xff]
        %v248 = vld [vmem:[%s212 + $0x8] sm:$0xff]
        %v249 = vld [vmem:[%s212 + $0x10] sm:$0xff]
        %v250 = vld [vmem:[%s212 + $0x18] sm:$0xff]
        %v251 = vld [vmem:[%s212 + $0x20] sm:$0xff]
        %v252 = vld [vmem:[%s212 + $0x28] sm:$0xff]
        %v253 = vld [vmem:[%s212 + $0x30] sm:$0xff]
        %v254 = vld [vmem:[%s212 + $0x38] sm:$0xff]
        %v255 = vld [vmem:[%s212 + $0x40] sm:$0xff]
        %v256 = vld [vmem:[%s212 + $0x48] sm:$0xff]
        %v257 = vld [vmem:[%s212 + $0x50] sm:$0xff]
        %v258 = vld [vmem:[%s212 + $0x58] sm:$0xff]
        %v259 = vld [vmem:[%s212 + $0x60] sm:$0xff]
        %v260 = vld [vmem:[%s212 + $0x68] sm:$0xff]
        %v261 = vld [vmem:[%s212 + $0x70] sm:$0xff]
        %v262 = vld [vmem:[%s212 + $0x78] sm:$0xff]
        %v263 = vld [vmem:[%s212 + $0x80] sm:$0xff]
        %v264 = vld [vmem:[%s212 + $0x88] sm:$0xff]
        %v265 = vld [vmem:[%s212 + $0x90] sm:$0xff]
        %v266 = vld [vmem:[%s212 + $0x98] sm:$0xff]
        %v267 = vld [vmem:[%s212 + $0xa0] sm:$0xff]
        %v268 = vld [vmem:[%s212 + $0xa8] sm:$0xff]
        %v269 = vld [vmem:[%s212 + $0xb0] sm:$0xff]
        %v270 = vld [vmem:[%s212 + $0xb8] sm:$0xff]
        %v271 = vld [vmem:[%s243] sm:$0x7]
        %v273 = vlaneseq
        %v274 = vshrl.u32 %v273, 7
        %v275 = vsub.s32 0, %v274
        %v276 = vrot.slane %v271, %v275
        %v277 = vlaneseq
        %v278 = vshrl.u32 %v277, 7
        %v279 = vsub.s32 1, %v278
        %v280 = vrot.slane %v271, %v279
        %v281 = vlaneseq
        %v282 = vshrl.u32 %v281, 7
        %v283 = vsub.s32 2, %v282
        %v284 = vrot.slane %v271, %v283
        %vm288 = vcmask 523264
        %v290 = vsel %vm288, %v245, 0
        %v293 = vsel %vm288, %v246, 0
        %295 = vmatprep.subr.mxu0 %v248
        %296 = vmatpush1.msra.mxu0 %v247
        %297 = vmatprep.subr.mxu0 %v251
        %298 = vmatpush1.msra.mxu0 %v250
        %299 = vmatprep.subr.mxu0 %v254
        %300 = vmatpush1.msra.mxu0 %v253
        %301 = vmatprep.subr.mxu0 %v257
        %302 = vmatpush1.msra.mxu0 %v256
        %303 = vmatprep.subr.mxu0 %v260
        %304 = vmatpush1.msra.mxu0 %v259
        %305 = vmatprep.subr.mxu0 %v263
        %306 = vmatpush1.msra.mxu0 %v262
        %307 = vmatprep.subr.mxu0 %v266
        %308 = vmatpush1.msra.mxu0 %v265
        %309 = vmatprep.subr.mxu0 %v269
        %310 = vmatpush1.msra.mxu0 %v268
        %311 = vmatprep.subr.mxu0 0.0
        %312 = vmatpush1.msra.mxu0 0.0
        %313 = vmatprep.subr.mxu0 0.0
        %314 = vmatpush1.msra.mxu0 0.0
        %315 = vmatprep.subr.mxu0 0.0
        %316 = vmatpush1.msra.mxu0 0.0
        %317 = vmatprep.subr.mxu0 0.0
        %318 = vmatpush1.msra.mxu0 0.0
        %319 = vmatprep.subr.mxu0 0.0
        %320 = vmatpush1.msra.mxu0 0.0
        %321 = vmatprep.subr.mxu0 0.0
        %322 = vmatpush1.msra.mxu0 0.0
        %323 = vmatprep.subr.mxu0 0.0
        %324 = vmatpush1.msra.mxu0 0.0
        %325 = vmatprep.subr.mxu0 0.0
        %326 = vmatpush1.msra.mxu0 0.0
        %327 = vmatprep.subr.mxu0 0.0
        %328 = vmatpush1.msra.mxu0 0.0
        %329 = vmatprep.subr.mxu0 0.0
        %330 = vmatpush1.msra.mxu0 0.0
        %331 = vmatprep.subr.mxu0 0.0
        %332 = vmatpush1.msra.mxu0 0.0
        %333 = vmatprep.subr.mxu0 0.0
        %334 = vmatpush1.msra.mxu0 0.0
        %335 = vmatprep.subr.mxu0 0.0
        %336 = vmatpush1.msra.mxu0 0.0
        %337 = vmatprep.subr.mxu0 0.0
        %338 = vmatpush1.msra.mxu0 0.0
        %339 = vmatprep.subr.mxu0 0.0
        %340 = vmatpush1.msra.mxu0 0.0
        %341 = vmatprep.subr.mxu0 0.0
        %342 = vmatpush1.msra.mxu0 0.0
        %343 = vmatprep.subr.mxu0 0.0
        %344 = vmatpush1.msra.mxu0 0.0
        %345 = vmatprep.subr.mxu0 0.0
        %346 = vmatpush1.msra.mxu0 0.0
        %347 = vmatprep.subr.mxu0 0.0
        %348 = vmatpush1.msra.mxu0 0.0
        %349 = vmatprep.subr.mxu0 0.0
        %350 = vmatpush1.msra.mxu0 0.0
        %351 = vmatprep.subr.mxu0 0.0
        %352 = vmatpush1.msra.mxu0 0.0
        %353 = vmatprep.subr.mxu0 0.0
        %354 = vmatpush1.msra.mxu0 0.0
        %355 = vmatprep.subr.mxu0 0.0
        %356 = vmatpush1.msra.mxu0 0.0
        %357 = vmatprep.subr.mxu0 0.0
        %358 = vmatpush1.msra.mxu0 0.0
        %359 = vmatprep.mubr.f32.mxu0 0.0
        %360 = vmatmul.mubr.f32.gmra.mrb[0].mxu0 %v290
        %v361 = vpop.f32.mrb[0].mxu0
        %v362 = vadd.f32 %v276, %v361
        %v363 = vpop.f32.mrb[0].mxu0
        %v364 = vadd.f32 %v280, %v363
        %365 = vmatprep.mubr.f32.mxu0 0.0
        %366 = vmatmul.mubr.f32.gmra.mrb[0].mxu0 %v293
        %v367 = vpop.f32.mrb[0].mxu0
        %v368 = vadd.f32 %v276, %v367
        %v369 = vpop.f32.mrb[0].mxu0
        %v370 = vadd.f32 %v280, %v369
        %371 = vdwg.mxu0
        %372 = vmatprep.subr.mxu0 0.0
        %373 = vmatpush1.msra.mxu0 %v249
        %374 = vmatprep.subr.mxu0 0.0
        %375 = vmatpush1.msra.mxu0 %v252
        %376 = vmatprep.subr.mxu0 0.0
        %377 = vmatpush1.msra.mxu0 %v255
        %378 = vmatprep.subr.mxu0 0.0
        %379 = vmatpush1.msra.mxu0 %v258
        %380 = vmatprep.subr.mxu0 0.0
        %381 = vmatpush1.msra.mxu0 %v261
        %382 = vmatprep.subr.mxu0 0.0
        %383 = vmatpush1.msra.mxu0 %v264
        %384 = vmatprep.subr.mxu0 0.0
        %385 = vmatpush1.msra.mxu0 %v267
        %386 = vmatprep.subr.mxu0 0.0
        %387 = vmatpush1.msra.mxu0 %v270
        %388 = vmatprep.subr.mxu0 0.0
        %389 = vmatpush1.msra.mxu0 0.0
        %390 = vmatprep.subr.mxu0 0.0
        %391 = vmatpush1.msra.mxu0 0.0
        %392 = vmatprep.subr.mxu0 0.0
        %393 = vmatpush1.msra.mxu0 0.0
        %394 = vmatprep.subr.mxu0 0.0
        %395 = vmatpush1.msra.mxu0 0.0
        %396 = vmatprep.subr.mxu0 0.0
        %397 = vmatpush1.msra.mxu0 0.0
        %398 = vmatprep.subr.mxu0 0.0
        %399 = vmatpush1.msra.mxu0 0.0
        %400 = vmatprep.subr.mxu0 0.0
        %401 = vmatpush1.msra.mxu0 0.0
        %402 = vmatprep.subr.mxu0 0.0
        %403 = vmatpush1.msra.mxu0 0.0
        %404 = vmatprep.subr.mxu0 0.0
        %405 = vmatpush1.msra.mxu0 0.0
        %406 = vmatprep.subr.mxu0 0.0
        %407 = vmatpush1.msra.mxu0 0.0
        %408 = vmatprep.subr.mxu0 0.0
        %409 = vmatpush1.msra.mxu0 0.0
        %410 = vmatprep.subr.mxu0 0.0
        %411 = vmatpush1.msra.mxu0 0.0
        %412 = vmatprep.subr.mxu0 0.0
        %413 = vmatpush1.msra.mxu0 0.0
        %414 = vmatprep.subr.mxu0 0.0
        %415 = vmatpush1.msra.mxu0 0.0
        %416 = vmatprep.subr.mxu0 0.0
        %417 = vmatpush1.msra.mxu0 0.0
        %418 = vmatprep.subr.mxu0 0.0
        %419 = vmatpush1.msra.mxu0 0.0
        %420 = vmatprep.subr.mxu0 0.0
        %421 = vmatpush1.msra.mxu0 0.0
        %422 = vmatprep.subr.mxu0 0.0
        %423 = vmatpush1.msra.mxu0 0.0
        %424 = vmatprep.subr.mxu0 0.0
        %425 = vmatpush1.msra.mxu0 0.0
        %426 = vmatprep.subr.mxu0 0.0
        %427 = vmatpush1.msra.mxu0 0.0
        %428 = vmatprep.subr.mxu0 0.0
        %429 = vmatpush1.msra.mxu0 0.0
        %430 = vmatprep.subr.mxu0 0.0
        %431 = vmatpush1.msra.mxu0 0.0
        %432 = vmatprep.subr.mxu0 0.0
        %433 = vmatpush1.msra.mxu0 0.0
        %434 = vmatprep.subr.mxu0 0.0
        %435 = vmatpush1.msra.mxu0 0.0
        %436 = vmatprep.mubr.f32.mxu0 0.0
        %437 = vmatmul.mubr.f32.gmra.mrb[0].mxu0 %v290
        %v438 = vpop.f32.mrb[0].mxu0
        %v439 = vadd.f32 %v284, %v438
        %v440 = vpop.f32.mrb[0].mxu0
        %441 = vmatprep.mubr.f32.mxu0 0.0
        %442 = vmatmul.mubr.f32.gmra.mrb[0].mxu0 %v293
        %v443 = vpop.f32.mrb[0].mxu0
        %v444 = vadd.f32 %v284, %v443
        %v445 = vpop.f32.mrb[0].mxu0
        %446 = vdwg.mxu0
        %447 = vst [vmem:[%s238] sm:$0xff] %v362
        %448 = vst [vmem:[%s238 + $0x8] sm:$0xff] %v364
        %449 = vst [vmem:[%s238 + $0x10] sm:$0xff] %v439
        %450 = vst [vmem:[%s238 + $0x18] sm:$0xff] %v368
        %451 = vst [vmem:[%s238 + $0x20] sm:$0xff] %v370
        %452 = vst [vmem:[%s238 + $0x28] sm:$0xff] %v444
        %s453 = sand.u32 %s121, 1
        %s454 = scalar_lea.sflag [#allocation4], %s453
        %s455 = sand.u32 %s121, 1
        %s456 = smul.addr %s455, 48
        %s457 = scalar_lea.vmem [#allocation7], %s456
        // Predicated region
        $region41: #{tpu_custom_call.1} parent=31 // pred_check
          %p458 = pneg %p131
        $region42: #{tpu_custom_call.1} parent=31 // pred_check_branch
          %460 = sbr.rel (%p458) target = $region44
        $region43: #{tpu_custom_call.1} parent=31 // pred_region
          %s461 = smul.u32 2, %s26
          %s463 = ssub.s32 768, 768
          %464 = vsyncadd %s454, %s463
          %s465 = smul.addr %s461, 3
          %s466 = smul.addr %s25, 6
          %s467 = sadd.s32 %s465, %s466
          %s468 = smul.addr %s467, 128
          %s469 = scalar_lea.hbm %s3, %s468
          %s470 = sshll.u32 %s457, 4
          %s471 = int_to_ptr.vmem [resolvable:$true] %s470
          %476 = dma.vmem_to_hbm [thread:$0]  %s471, 768, %s469, %s454, 384, 384, 24
        $region44: #{tpu_custom_call.1} parent=31 // pred_fallthru
          _
      $region32: #{tpu_custom_call.1} parent=5 // pred_fallthru
        _
      %p477 = scmp.le.s32.totalorder 2, %s16
      // Predicated region
      $region45: #{tpu_custom_call.1} parent=5 // pred_check
        %p478 = pneg %p477
      $region46: #{tpu_custom_call.1} parent=5 // pred_check_branch
        %480 = sbr.rel (%p478) target = $region48
      $region47: #{tpu_custom_call.1} parent=5 // pred_region
        %s481 = ssub.s32 %s16, 2
        // Predicated region
        $region49: #{tpu_custom_call.1} parent=47 // pred_check
          %p482 = pneg %p137
        $region50: #{tpu_custom_call.1} parent=47 // pred_check_branch
          %484 = sbr.rel (%p482) target = $region52
        $region51: #{tpu_custom_call.1} parent=47 // pred_region
          %s485 = sand.u32 %s122, 1
          %s486 = scalar_lea.sflag [#allocation4], %s485
          %s487 = sand.u32 %s122, 1
          %s488 = smul.addr %s487, 48
          %s489 = scalar_lea.vmem [#allocation7], %s488
          %490 = dma.done %s486, 768
        $region52: #{tpu_custom_call.1} parent=47 // pred_fallthru
          _
      $region48: #{tpu_custom_call.1} parent=5 // pred_fallthru
        _
    $region6: #{tpu_custom_call.1} parent=1 // loop_footer
      %s20 = sadd.s32 1, %s16
    $region7: #{tpu_custom_call.1} parent=1 // loop_footer_branch
      %15 = sbr.rel target = $region3
    $region8: #{tpu_custom_call.1} parent=1 // loop_exit
      _
    %491 = vsyncpa [#allocation3], 1
    %s492 = scalar_lea.sflag [#allocation3], 1
    %493 = vsyncpa %s492, 1
    %494 = vsyncpa [#allocation6], 1
    %s495 = scalar_lea.sflag [#allocation6], 1
    %496 = vsyncpa %s495, 1
    %497 = vsyncpa [#allocation4], 1
    %s498 = scalar_lea.sflag [#allocation4], 1
    %499 = vsyncpa %s498, 1

</llo_original>
